<compile_context>
chip_gen: v6e
topology: v6e:2x2x1
jax: 0.10.0
libtpu: 0.0.40
codegen_flags: <defaults>
</compile_context>

<pallas_src>
import functools

import jax
import jax.numpy as jnp
import numpy as np
from jax.experimental import pallas as pl
from jax.experimental.pallas import tpu as pltpu


def _round_up(x, m):
    return (x + m - 1) // m * m


# --------------------------------------------------------------------------
# Fused kernel: projection + online softmax(s2) + weighted sum over all nodes
# --------------------------------------------------------------------------
def _gat_fused_kernel(x_ref, w_ref, o_ref, m_sc, l_sc, acc_sc,
                      *, n_valid, s2_col, tile):
    k = pl.program_id(0)

    @pl.when(k == 0)
    def _init():
        m_sc[...] = jnp.full_like(m_sc[...], -jnp.inf)
        l_sc[...] = jnp.zeros_like(l_sc[...])
        acc_sc[...] = jnp.zeros_like(acc_sc[...])

    # One MXU pass: columns [0:Fout] = h rows, column s2_col = s2 = h @ a2.
    ha = jnp.dot(x_ref[...], w_ref[...],
                 preferred_element_type=jnp.float32)            # (tile, Fa) f32

    s2 = ha[:, s2_col:s2_col + 1]                                # (tile, 1)
    # Mask padded rows (finite -1e30, not -inf: tile 0 always holds valid rows
    # so the running max stays finite and exp never sees inf - inf).
    row = k * tile + jax.lax.broadcasted_iota(jnp.int32, (tile, 1), 0)
    s2 = jnp.where(row < n_valid, s2, -1e30)

    m_prev = m_sc[...]                                           # (1, 1)
    m_new = jnp.maximum(m_prev, jnp.max(s2, axis=0, keepdims=True))
    alpha = jnp.exp(m_prev - m_new)                              # (1, 1)
    p = jnp.exp(s2 - m_new)                                      # (tile, 1)

    l_sc[...] = alpha * l_sc[...] + jnp.sum(p, axis=0, keepdims=True)
    # Weighted sum of h rows: VPU multiply + sublane reduce (no degenerate
    # M=1 matmul, no transpose).  Padded rows contribute 0 (x rows are zero).
    acc_sc[...] = alpha * acc_sc[...] + jnp.sum(p * ha, axis=0, keepdims=True)
    m_sc[...] = m_new

    @pl.when(k == pl.num_programs(0) - 1)
    def _finalize():
        l = l_sc[...]
        inv_l = pl.reciprocal(l, approx=True)        # EUP (free slot)
        inv_l = inv_l * (2.0 - l * inv_l)            # one Newton step, (1,1)
        o_ref[...] = (acc_sc[...] * inv_l).astype(o_ref.dtype)


# --------------------------------------------------------------------------
# Wrapper
# --------------------------------------------------------------------------
def gat_layer(x, adj, W, a, *, tk=1024):
    """x: (N, Fin), adj: (N, N) (unused by the reference forward),
    W: (Fout, Fin), a: (1, 2*Fout).  Returns (N, Fout) in x.dtype."""
    del adj  # unused by the reference forward (no graph masking applied)

    x = jnp.asarray(x)
    out_dtype = x.dtype
    N, Fin = x.shape
    Fout = W.shape[0]

    Wf = jnp.asarray(W, jnp.float32)
    af = jnp.asarray(a, jnp.float32).reshape(-1)
    a2 = af[Fout:]  # a1 (= af[:Fout]) cancels in the row-wise softmax

    # Augmented, lane-dense projection matrix [W^T | 0 | c2] with c2 = W^T a2.
    Fa = _round_up(Fout + 1, 128)
    s2_col = Fout
    w_aug = jnp.zeros((Fin, Fa), jnp.float32)
    w_aug = w_aug.at[:, :Fout].set(Wf.T)
    w_aug = w_aug.at[:, s2_col].set(Wf.T @ a2)

    # Row tile: large (overhead-dominated K=16 matmul), multiple of 8,
    # clamped to the (padded) problem size.  n_pad = round_up(N, tile).
    tk_eff = max(8, min(_round_up(tk, 8), _round_up(N, 8)))
    n_pad = _round_up(N, tk_eff)
    x_pad = jnp.pad(x.astype(jnp.float32), ((0, n_pad - N), (0, 0)))

    grid = (n_pad // tk_eff,)
    row_out = pl.pallas_call(
        functools.partial(_gat_fused_kernel,
                          n_valid=N, s2_col=s2_col, tile=tk_eff),
        out_shape=jax.ShapeDtypeStruct((1, Fa), jnp.float32),
        grid_spec=pltpu.PrefetchScalarGridSpec(
            num_scalar_prefetch=0,
            grid=grid,
            in_specs=[
                pl.BlockSpec((tk_eff, Fin), lambda k: (k, 0)),   # x row tile
                pl.BlockSpec((Fin, Fa), lambda k: (0, 0)),       # weights resident
            ],
            out_specs=pl.BlockSpec((1, Fa), lambda k: (0, 0)),   # accumulator-style
            scratch_shapes=[
                pltpu.VMEM((1, 1), jnp.float32),     # running max  m
                pltpu.VMEM((1, 1), jnp.float32),     # running sum  l
                pltpu.VMEM((1, Fa), jnp.float32),    # f32 weighted-sum accumulator
            ],
        ),
        compiler_params=pltpu.CompilerParams(
            dimension_semantics=("arbitrary",),      # single reduction axis
        ),
        cost_estimate=pl.CostEstimate(
            flops=2 * n_pad * Fin * Fa + 4 * n_pad * Fa,
            transcendentals=n_pad,
            bytes_accessed=(n_pad * Fin + Fin * Fa + Fa) * 4,
        ),
    )(x_pad, w_aug)

    # Every output row is identical; broadcast the single f32 row (pure data
    # movement, done in XLA as the review allows) and cast back to x.dtype.
    out_row = row_out[0, :Fout]
    return jnp.broadcast_to(out_row, (N, Fout)).astype(out_dtype)


# --------------------------------------------------------------------------
# Plain-JAX reference of the forward semantics (full softmax, includes s1)
# --------------------------------------------------------------------------
def gat_reference(x, W, a):
    h = x @ W.T
    Fout = W.shape[0]
    s1 = h @ a[0, :Fout]
    s2 = h @ a[0, Fout:]
    e = s1[:, None] + s2[None, :]
    att = jax.nn.softmax(e, axis=1)
    return att @ h


if __name__ == "__main__":
    key = jax.random.PRNGKey(0)
    k_x1, k_x2, k_w, k_a = jax.random.split(key, 4)

    in_features, out_features = 16, 32

    # Deterministic parameter init (nn.Linear-style uniform bounds).
    bound_w = 1.0 / np.sqrt(in_features)
    W = jax.random.uniform(k_w, (out_features, in_features),
                           minval=-bound_w, maxval=bound_w, dtype=jnp.float32)
    bound_a = 1.0 / np.sqrt(2 * out_features)
    a = jax.random.uniform(k_a, (1, 2 * out_features),
                           minval=-bound_a, maxval=bound_a, dtype=jnp.float32)

    # --- case 1: the module's N = 40 nodes (single-tile grid) ---
    N1 = 40
    x1 = jax.random.normal(k_x1, (N1, in_features), dtype=jnp.float32)
    adj1 = jnp.ones((N1, N1), dtype=jnp.float32)   # unused, kept for fidelity
    ref1 = gat_reference(x1, W, a)
    out1 = jax.block_until_ready(gat_layer(x1, adj1, W, a))
    np.testing.assert_allclose(np.asarray(out1), np.asarray(ref1),
                               rtol=2e-3, atol=2e-3)

    # --- case 2: larger N with a small row tile -> multi-step online softmax
    #     reduction plus padded-row masking (n_pad = 384 > N = 300) ---
    N2 = 300
    x2 = jax.random.normal(k_x2, (N2, in_features), dtype=jnp.float32)
    adj2 = jnp.ones((N2, N2), dtype=jnp.float32)   # unused, kept for fidelity
    ref2 = gat_reference(x2, W, a)
    out2 = jax.block_until_ready(gat_layer(x2, adj2, W, a, tk=128))
    np.testing.assert_allclose(np.asarray(out2), np.asarray(ref2),
                               rtol=2e-3, atol=2e-3)

    print("KERNEL_OK")
</pallas_src>

<mosaic_0001>
module attributes {stable_mosaic.version = 11 : i64} {
  func.func @_gat_fused_kernel(%arg0: i32, %arg1: memref<40x16xf32, #tpu.memory_space<vmem>>, %arg2: memref<16x128xf32, #tpu.memory_space<vmem>>, %arg3: memref<1x128xf32, #tpu.memory_space<vmem>>, %arg4: memref<1x1xf32, #tpu.memory_space<vmem>>, %arg5: memref<1x1xf32, #tpu.memory_space<vmem>>, %arg6: memref<1x128xf32, #tpu.memory_space<vmem>>) attributes {dimension_semantics = [#tpu.dimension_semantics<arbitrary>], iteration_bounds = array<i64: 1>, scalar_prefetch = 0 : i64, scratch_operands = 3 : i64, tpu.core_type = #tpu.core_type<tc>, window_params = [{transform_indices = @transform_0, window_bounds = array<i64: 40, 16>}, {pipeline_mode = #tpu.pipeline_mode<synchronous>, transform_indices = @transform_1, window_bounds = array<i64: 16, 128>}, {pipeline_mode = #tpu.pipeline_mode<synchronous>, transform_indices = @transform_2, window_bounds = array<i64: 1, 128>}]} {
    %c0_i32 = arith.constant 0 : i32
    %0 = arith.cmpi eq, %arg0, %c0_i32 : i32
    %1 = arith.extui %0 : i1 to i32
    %c0_i32_0 = arith.constant 0 : i32
    %2 = arith.cmpi ne, %1, %c0_i32_0 : i32
    scf.if %2 {
      %cst_23 = arith.constant 0xFF800000 : f32
      %43 = vector.broadcast %cst_23 : f32 to vector<1x1xf32>
      %c0_24 = arith.constant 0 : index
      %c0_25 = arith.constant 0 : index
      %44 = vector.load %arg4[%c0_24, %c0_25] : memref<1x1xf32, #tpu.memory_space<vmem>>, vector<1x1xf32>
      tpu.vector_store %arg4[%c0_24, %c0_25], %43 {strides = array<i32>} : memref<1x1xf32, #tpu.memory_space<vmem>>, vector<1x1xf32>,
      %cst_26 = arith.constant 0.000000e+00 : f32
      %45 = vector.broadcast %cst_26 : f32 to vector<1x1xf32>
      %c0_27 = arith.constant 0 : index
      %c0_28 = arith.constant 0 : index
      %46 = vector.load %arg5[%c0_27, %c0_28] : memref<1x1xf32, #tpu.memory_space<vmem>>, vector<1x1xf32>
      tpu.vector_store %arg5[%c0_27, %c0_28], %45 {strides = array<i32>} : memref<1x1xf32, #tpu.memory_space<vmem>>, vector<1x1xf32>,
      %cst_29 = arith.constant 0.000000e+00 : f32
      %47 = vector.broadcast %cst_29 : f32 to vector<1x128xf32>
      %c0_30 = arith.constant 0 : index
      %c0_31 = arith.constant 0 : index
      %48 = vector.load %arg6[%c0_30, %c0_31] : memref<1x128xf32, #tpu.memory_space<vmem>>, vector<1x128xf32>
      tpu.vector_store %arg6[%c0_30, %c0_31], %47 {strides = array<i32>} : memref<1x128xf32, #tpu.memory_space<vmem>>, vector<1x128xf32>,
    } else {
    }
    %c0 = arith.constant 0 : index
    %c0_1 = arith.constant 0 : index
    %3 = vector.load %arg1[%c0, %c0_1] : memref<40x16xf32, #tpu.memory_space<vmem>>, vector<40x16xf32>
    %c0_2 = arith.constant 0 : index
    %c0_3 = arith.constant 0 : index
    %4 = vector.load %arg2[%c0_2, %c0_3] : memref<16x128xf32, #tpu.memory_space<vmem>>, vector<16x128xf32>
    %cst = arith.constant dense<0.000000e+00> : vector<40x128xf32>
    %5 = tpu.matmul %3, %4, %cst {dimension_numbers = #tpu.dot_dimension_numbers<[1], [0], [0], [1], [0, 0, 1, 1], [], []>} : vector<40x16xf32>, vector<16x128xf32>, vector<40x128xf32> -> vector<40x128xf32>
    %6 = vector.extract_strided_slice %5 {offsets = [0, 32], sizes = [40, 1], strides = [1, 1]} : vector<40x128xf32> to vector<40x1xf32>
    %c40_i32 = arith.constant 40 : i32
    %7 = arith.muli %arg0, %c40_i32 : i32
    %8 = tpu.iota {dimensions = array<i32: 0>} : vector<40x1xi32>
    %9 = vector.broadcast %7 : i32 to vector<40x1xi32>
    %10 = arith.addi %9, %8 : vector<40x1xi32>
    %c40_i32_4 = arith.constant 40 : i32
    %11 = vector.broadcast %c40_i32_4 : i32 to vector<40x1xi32>
    %12 = arith.cmpi slt, %10, %11 : vector<40x1xi32>
    %cst_5 = arith.constant -1.000000e+30 : f32
    %13 = vector.broadcast %cst_5 : f32 to vector<40x1xf32>
    %14 = arith.select %12, %6, %13 : vector<40x1xi1>, vector<40x1xf32>
    %c0_6 = arith.constant 0 : index
    %c0_7 = arith.constant 0 : index
    %15 = vector.load %arg4[%c0_6, %c0_7] : memref<1x1xf32, #tpu.memory_space<vmem>>, vector<1x1xf32>
    %cst_8 = arith.constant dense<0xFF800000> : vector<1xf32>
    %16 = vector.multi_reduction <maximumf>, %14, %cst_8 [0] : vector<40x1xf32> to vector<1xf32>
    %17 = vector.shape_cast %16 : vector<1xf32> to vector<1x1xf32>
    %18 = arith.maximumf %15, %17 : vector<1x1xf32>
    %19 = arith.subf %15, %18 : vector<1x1xf32>
    %20 = math.exp %19 : vector<1x1xf32>
    %21 = vector.broadcast %18 : vector<1x1xf32> to vector<40x1xf32>
    %22 = arith.subf %14, %21 : vector<40x1xf32>
    %23 = math.exp %22 : vector<40x1xf32>
    %c0_9 = arith.constant 0 : index
    %c0_10 = arith.constant 0 : index
    %24 = vector.load %arg5[%c0_9, %c0_10] : memref<1x1xf32, #tpu.memory_space<vmem>>, vector<1x1xf32>
    %25 = arith.mulf %20, %24 : vector<1x1xf32>
    %cst_11 = arith.constant dense<0.000000e+00> : vector<1xf32>
    %26 = vector.multi_reduction <add>, %23, %cst_11 [0] : vector<40x1xf32> to vector<1xf32>
    %27 = vector.shape_cast %26 : vector<1xf32> to vector<1x1xf32>
    %28 = arith.addf %25, %27 : vector<1x1xf32>
    %c0_12 = arith.constant 0 : index
    %c0_13 = arith.constant 0 : index
    %29 = vector.load %arg5[%c0_12, %c0_13] : memref<1x1xf32, #tpu.memory_space<vmem>>, vector<1x1xf32>
    tpu.vector_store %arg5[%c0_12, %c0_13], %28 {strides = array<i32>} : memref<1x1xf32, #tpu.memory_space<vmem>>, vector<1x1xf32>,
    %c0_14 = arith.constant 0 : index
    %c0_15 = arith.constant 0 : index
    %30 = vector.load %arg6[%c0_14, %c0_15] : memref<1x128xf32, #tpu.memory_space<vmem>>, vector<1x128xf32>
    %31 = vector.broadcast %20 : vector<1x1xf32> to vector<1x128xf32>
    %32 = arith.mulf %31, %30 : vector<1x128xf32>
    %33 = vector.broadcast %23 : vector<40x1xf32> to vector<40x128xf32>
    %34 = arith.mulf %33, %5 : vector<40x128xf32>
    %cst_16 = arith.constant dense<0.000000e+00> : vector<128xf32>
    %35 = vector.multi_reduction <add>, %34, %cst_16 [0] : vector<40x128xf32> to vector<128xf32>
    %36 = vector.shape_cast %35 : vector<128xf32> to vector<1x128xf32>
    %37 = arith.addf %32, %36 : vector<1x128xf32>
    %c0_17 = arith.constant 0 : index
    %c0_18 = arith.constant 0 : index
    %38 = vector.load %arg6[%c0_17, %c0_18] : memref<1x128xf32, #tpu.memory_space<vmem>>, vector<1x128xf32>
    tpu.vector_store %arg6[%c0_17, %c0_18], %37 {strides = array<i32>} : memref<1x128xf32, #tpu.memory_space<vmem>>, vector<1x128xf32>,
    %c0_19 = arith.constant 0 : index
    %c0_20 = arith.constant 0 : index
    %39 = vector.load %arg4[%c0_19, %c0_20] : memref<1x1xf32, #tpu.memory_space<vmem>>, vector<1x1xf32>
    tpu.vector_store %arg4[%c0_19, %c0_20], %18 {strides = array<i32>} : memref<1x1xf32, #tpu.memory_space<vmem>>, vector<1x1xf32>,
    %c0_i32_21 = arith.constant 0 : i32
    %40 = arith.cmpi eq, %arg0, %c0_i32_21 : i32
    %41 = arith.extui %40 : i1 to i32
    %c0_i32_22 = arith.constant 0 : i32
    %42 = arith.cmpi ne, %41, %c0_i32_22 : i32
    scf.if %42 {
      %c0_23 = arith.constant 0 : index
      %c0_24 = arith.constant 0 : index
      %43 = vector.load %arg5[%c0_23, %c0_24] : memref<1x1xf32, #tpu.memory_space<vmem>>, vector<1x1xf32>
      %44 = tpu.reciprocal %43 {approx = true} : vector<1x1xf32> -> vector<1x1xf32>
      %45 = arith.mulf %43, %44 : vector<1x1xf32>
      %cst_25 = arith.constant 2.000000e+00 : f32
      %46 = vector.broadcast %cst_25 : f32 to vector<1x1xf32>
      %47 = arith.subf %46, %45 : vector<1x1xf32>
      %48 = arith.mulf %44, %47 : vector<1x1xf32>
      %c0_26 = arith.constant 0 : index
      %c0_27 = arith.constant 0 : index
      %49 = vector.load %arg6[%c0_26, %c0_27] : memref<1x128xf32, #tpu.memory_space<vmem>>, vector<1x128xf32>
      %50 = vector.broadcast %48 : vector<1x1xf32> to vector<1x128xf32>
      %51 = arith.mulf %49, %50 : vector<1x128xf32>
      %c0_28 = arith.constant 0 : index
      %c0_29 = arith.constant 0 : index
      %52 = vector.load %arg3[%c0_28, %c0_29] : memref<1x128xf32, #tpu.memory_space<vmem>>, vector<1x128xf32>
      tpu.vector_store %arg3[%c0_28, %c0_29], %51 {strides = array<i32>} : memref<1x128xf32, #tpu.memory_space<vmem>>, vector<1x128xf32>,
    } else {
    }
    return
  }
  func.func @transform_0(%arg0: i32) -> (i32, i32) {
    %c0_i32 = arith.constant 0 : i32
    %c0_i32_0 = arith.constant 0 : i32
    return %arg0, %c0_i32 : i32, i32
  }
  func.func @transform_1(%arg0: i32) -> (i32, i32) {
    %c0_i32 = arith.constant 0 : i32
    %c0_i32_0 = arith.constant 0 : i32
    %c0_i32_1 = arith.constant 0 : i32
    return %c0_i32, %c0_i32_0 : i32, i32
  }
  func.func @transform_2(%arg0: i32) -> (i32, i32) {
    %c0_i32 = arith.constant 0 : i32
    %c0_i32_0 = arith.constant 0 : i32
    %c0_i32_1 = arith.constant 0 : i32
    return %c0_i32, %c0_i32_0 : i32, i32
  }
}

</mosaic_0001>

<llo_original>
// kernel: tpu_custom_call.1
$region0: #{tpu_custom_call.1}
  #allocation0 [shape = 'u32[]', space=smem, size = 0x4, offset = 0x4, fixed_abs, tag = 'smem constant byte address 0x4 - core index']
  #allocation1 [shape = 'u32[144,128]{1,0:T(1,128)}', space=vmem, size = 0x12000, scoped, tag = 'internal scratch']
  #allocation2 [shape = 'f32[1,1]{1,0:T(1,128)}', space=vmem, size = 0x200, scoped, tag = 'scratch operand']
  #allocation3 [shape = 'f32[1,1]{1,0:T(1,128)}', space=vmem, size = 0x200, scoped, tag = 'scratch operand']
  #allocation4 [shape = 'f32[1,128]{1,0:T(1,128)}', space=vmem, size = 0x200, scoped, tag = 'scratch operand']
  %s0 = inlined_call_operand.vmem [shape: f32[40,16], index: 0, kind: input, shape index: {}]
  %s1 = inlined_call_operand.vmem [shape: f32[16,128], index: 1, kind: input, shape index: {}]
  %s2 = inlined_call_operand.hbm [shape: f32[1,128], index: 2, kind: output, shape index: {}]
  %s3 = sld [smem:[#allocation0]]
  $region26: #{tpu_custom_call.1} parent=0
    _
  %s5 = ssub.s32 1, %s3
  %s6 = scalar_select 0, %s5, %s3
  $region1: #{tpu_custom_call.1} parent=0
    #allocation5 [shape = 'u8[512]{0}', space=vmem, size = 0x400, scoped, tag = 'output window, operand 0, single buffered']
    #allocation6 [shape = 's32[1]{0}', space=sflag, size = 0x4, scoped, tag = 'scoped memory for tpu_custom_call.1']
    %7 = vsyncpa [#allocation6], 0
    // Predicated region
    $region2: #{tpu_custom_call.1} parent=1 // pred_check
      _
    $region3: #{tpu_custom_call.1} parent=1 // pred_check_branch
      %9 = sbr.rel (0) target = $region5
    $region4: #{tpu_custom_call.1} parent=1 // pred_region
      _
    $region5: #{tpu_custom_call.1} parent=1 // pred_fallthru
      _
    // Predicated region
    $region6: #{tpu_custom_call.1} parent=1 // pred_check
      _
    $region7: #{tpu_custom_call.1} parent=1 // pred_check_branch
      %11 = sbr.rel (0) target = $region9
    $region8: #{tpu_custom_call.1} parent=1 // pred_region
      _
    $region9: #{tpu_custom_call.1} parent=1 // pred_fallthru
      _
    %p12 = scmp.eq.s32.totalorder 0, 0
    // Predicated region
    $region10: #{tpu_custom_call.1} parent=1 // pred_check
      %p13 = pneg %p12
    $region11: #{tpu_custom_call.1} parent=1 // pred_check_branch
      %15 = sbr.rel (%p13) target = $region13
    $region12: #{tpu_custom_call.1} parent=1 // pred_region
      %vm16 = vcmask 0
      %17 = vst.msk [vmem:[#allocation2] sm:$0x1] %vm16, -inf
      %18 = vst.msk [vmem:[#allocation3] sm:$0x1] %vm16, 0.0
      %19 = vst [vmem:[#allocation4] sm:$0x1] 0.0
    $region13: #{tpu_custom_call.1} parent=1 // pred_fallthru
      _
    %v20 = vld [vmem:[%s0] sm:$0xff]
    %v21 = vld [vmem:[%s0 + $0x8] sm:$0xff]
    %v22 = vld [vmem:[%s0 + $0x10] sm:$0xff]
    %v23 = vld [vmem:[%s0 + $0x18] sm:$0xff]
    %v24 = vld [vmem:[%s0 + $0x20] sm:$0xff]
    %v25 = vld [vmem:[%s1] sm:$0xff]
    %v26 = vld [vmem:[%s1 + $0x8] sm:$0xff]
    %vm27 = vcmask 130048
    %v29 = vsel %vm27, %v20, 0
    %v32 = vsel %vm27, %v21, 0
    %v35 = vsel %vm27, %v22, 0
    %v38 = vsel %vm27, %v23, 0
    %v41 = vsel %vm27, %v24, 0
    %43 = vmatprep.subr.mxu0 0.0
    %44 = vmatpush1.msra.mxu0 0.0
    %45 = vmatprep.subr.mxu0 0.0
    %46 = vmatpush1.msra.mxu0 0.0
    %47 = vmatprep.subr.mxu0 0.0
    %48 = vmatpush1.msra.mxu0 0.0
    %49 = vmatprep.subr.mxu0 0.0
    %50 = vmatpush1.msra.mxu0 0.0
    %51 = vmatprep.subr.mxu0 0.0
    %52 = vmatpush1.msra.mxu0 0.0
    %53 = vmatprep.subr.mxu0 0.0
    %54 = vmatpush1.msra.mxu0 0.0
    %55 = vmatprep.subr.mxu0 0.0
    %56 = vmatpush1.msra.mxu0 0.0
    %57 = vmatprep.subr.mxu0 0.0
    %58 = vmatpush1.msra.mxu0 0.0
    %59 = vmatprep.subr.mxu0 0.0
    %60 = vmatpush1.msra.mxu0 0.0
    %61 = vmatprep.subr.mxu0 0.0
    %62 = vmatpush1.msra.mxu0 0.0
    %63 = vmatprep.subr.mxu0 0.0
    %64 = vmatpush1.msra.mxu0 0.0
    %65 = vmatprep.subr.mxu0 0.0
    %66 = vmatpush1.msra.mxu0 0.0
    %67 = vmatprep.subr.mxu0 0.0
    %68 = vmatpush1.msra.mxu0 0.0
    %69 = vmatprep.subr.mxu0 0.0
    %70 = vmatpush1.msra.mxu0 0.0
    %71 = vmatprep.subr.mxu0 0.0
    %72 = vmatpush1.msra.mxu0 %v26
    %73 = vmatprep.subr.mxu0 0.0
    %74 = vmatpush1.msra.mxu0 %v25
    %75 = vmatprep.subr.mxu0 0.0
    %76 = vmatpush2.msra.mxu0 0.0
    %77 = vmatprep.subr.mxu0 0.0
    %78 = vmatpush2.msra.mxu0 0.0
    %79 = vmatprep.subr.mxu0 0.0
    %80 = vmatpush2.msra.mxu0 0.0
    %81 = vmatprep.subr.mxu0 0.0
    %82 = vmatpush2.msra.mxu0 0.0
    %83 = vmatprep.subr.mxu0 0.0
    %84 = vmatpush2.msra.mxu0 0.0
    %85 = vmatprep.subr.mxu0 0.0
    %86 = vmatpush2.msra.mxu0 0.0
    %87 = vmatprep.subr.mxu0 0.0
    %88 = vmatpush2.msra.mxu0 0.0
    %89 = vmatprep.subr.mxu0 0.0
    %90 = vmatpush2.msra.mxu0 0.0
    %91 = vmatprep.subr.mxu0 0.0
    %92 = vmatpush2.msra.mxu0 0.0
    %93 = vmatprep.subr.mxu0 0.0
    %94 = vmatpush2.msra.mxu0 0.0
    %95 = vmatprep.subr.mxu0 0.0
    %96 = vmatpush2.msra.mxu0 0.0
    %97 = vmatprep.subr.mxu0 0.0
    %98 = vmatpush2.msra.mxu0 0.0
    %99 = vmatprep.subr.mxu0 0.0
    %100 = vmatpush2.msra.mxu0 0.0
    %101 = vmatprep.subr.mxu0 0.0
    %102 = vmatpush2.msra.mxu0 0.0
    %103 = vmatprep.subr.mxu0 0.0
    %104 = vmatpush2.msra.mxu0 0.0
    %105 = vmatprep.subr.mxu0 0.0
    %106 = vmatpush2.msra.mxu0 0.0
    %107 = vmatprep.mubr.f32.mxu0 0.0
    %108 = vmatmul.mubr.f32.gmra.mxu0 %v29
    %v109 = vpop.f32.mrf.mxu0
    %v110 = vadd.f32 0.0, %v109
    %v111 = vpop.f32.mrf.mxu0
    %112 = vmatprep.mubr.f32.mxu0 0.0
    %113 = vmatmul.mubr.f32.gmra.mxu0 %v32
    %v114 = vpop.f32.mrf.mxu0
    %v115 = vadd.f32 0.0, %v114
    %v116 = vpop.f32.mrf.mxu0
    %117 = vmatprep.mubr.f32.mxu0 0.0
    %118 = vmatmul.mubr.f32.gmra.mxu0 %v35
    %v119 = vpop.f32.mrf.mxu0
    %v120 = vadd.f32 0.0, %v119
    %v121 = vpop.f32.mrf.mxu0
    %122 = vmatprep.mubr.f32.mxu0 0.0
    %123 = vmatmul.mubr.f32.gmra.mxu0 %v38
    %v124 = vpop.f32.mrf.mxu0
    %v125 = vadd.f32 0.0, %v124
    %v126 = vpop.f32.mrf.mxu0
    %127 = vmatprep.mubr.f32.mxu0 0.0
    %128 = vmatmul.mubr.f32.gmra.mxu0 %v41
    %v129 = vpop.f32.mrf.mxu0
    %v130 = vadd.f32 0.0, %v129
    %v131 = vpop.f32.mrf.mxu0
    %132 = vdwg.mxu0
    %s133 = smul.u32 0, 40
    %v134 = vlaneseq
    %v135 = vshrl.u32 %v134, 7
    %v136 = vadd.s32 %v135, 8
    %v137 = vadd.s32 %v135, 16
    %v138 = vadd.s32 %v135, 24
    %v139 = vadd.s32 %v135, 32
    %v140 = vstv %s133
    %v141 = vadd.s32 %v140, %v135
    %v142 = vadd.s32 %v140, %v136
    %v143 = vadd.s32 %v140, %v137
    %v144 = vadd.s32 %v140, %v138
    %v145 = vadd.s32 %v140, %v139
    %vm146 = vcmp.lt.s32.totalorder %v141, 40
    %vm147 = vcmp.lt.s32.totalorder %v142, 40
    %vm148 = vcmp.lt.s32.totalorder %v143, 40
    %vm149 = vcmp.lt.s32.totalorder %v144, 40
    %vm150 = vcmp.lt.s32.totalorder %v145, 40
    %v151 = vsel %vm146, %v110, -1e+30
    %v152 = vsel %vm147, %v115, -1e+30
    %v153 = vsel %vm148, %v120, -1e+30
    %v154 = vsel %vm149, %v125, -1e+30
    %v155 = vsel %vm150, %v130, -1e+30
    %v156 = vld [vmem:[#allocation2] sm:$0x1]
    %vm157 = vcmask 269568
    %v158 = vsel %vm157, %v151, -inf
    %v159 = vsel %vm157, %v152, -inf
    %v160 = vsel %vm157, %v153, -inf
    %v161 = vsel %vm157, %v154, -inf
    %v162 = vsel %vm157, %v155, -inf
    %v163 = vmax.f32 %v158, %v162
    %v164 = vmax.f32 %v163, %v159
    %v165 = vmax.f32 %v160, %v161
    %v166 = vmax.f32 %v164, %v165
    %v167 = vrot.slane %v166, 4
    %v168 = vmax.f32 %v166, %v167
    %v169 = vrot.slane %v168, 2
    %v170 = vmax.f32 %v168, %v169
    %v171 = vrot.slane %v170, 1
    %v172 = vmax.f32 %v170, %v171
    %v175 = vunpack.c.l.s4 1966171168
    %v176 = vunpack.c.0.s8 %v175
    %v177 = vlaneseq
    %v178 = vshrl.u32 %v177, 7
    %v179 = vsub.s32 %v176, %v178
    %v180 = vrot.slane %v172, %v179
    %v182 = vunpack.c.l.s4 1966171168
    %v183 = vunpack.c.0.s8 %v182
    %v184 = vlaneseq
    %v185 = vshrl.u32 %v184, 7
    %v186 = vsub.s32 %v183, %v185
    %v187 = vrot.slane %v180, %v186
    %188 = vrot.lane.b32.xlu0 %v187, 96
    %v189 = vpop.permute.xlu0 %188
    %v191 = vmax.f32 %v156, %v189
    %v192 = vsub.f32 %v156, %v191
    %v193 = vmul.f32 %v192, 1.442695
    %v194 = vpow.pop %v193
    %v196 = vlaneseq
    %v197 = vshrl.u32 %v196, 7
    %v198 = vsub.s32 0, %v197
    %v199 = vrot.slane %v191, %v198
    %200 = vrot.lane.b32.xlu0 %v199, 32
    %v201 = vpop.permute.xlu0 %200
    %v203 = vsub.f32 %v151, %v201
    %v204 = vsub.f32 %v152, %v201
    %v205 = vsub.f32 %v153, %v201
    %v206 = vsub.f32 %v154, %v201
    %v207 = vsub.f32 %v155, %v201
    %v208 = vmul.f32 %v203, 1.442695
    %v209 = vpow.pop %v208
    %v210 = vmul.f32 %v204, 1.442695
    %v211 = vpow.pop %v210
    %v212 = vmul.f32 %v205, 1.442695
    %v213 = vpow.pop %v212
    %v214 = vmul.f32 %v206, 1.442695
    %v215 = vpow.pop %v214
    %v216 = vmul.f32 %v207, 1.442695
    %v217 = vpow.pop %v216
    %v218 = vld [vmem:[#allocation3] sm:$0x1]
    %v219 = vmul.f32 %v194, %v218
    %v220 = vsel %vm157, %v209, 0.0
    %v221 = vsel %vm157, %v211, 0.0
    %v222 = vadd.f32 %v220, %v221
    %v223 = vsel %vm157, %v213, 0.0
    %v224 = vadd.f32 %v222, %v223
    %v225 = vsel %vm157, %v215, 0.0
    %v226 = vadd.f32 %v224, %v225
    %v227 = vsel %vm157, %v217, 0.0
    %v228 = vadd.f32 %v226, %v227
    %v229 = vrot.slane %v228, 4
    %v230 = vadd.f32 %v228, %v229
    %v231 = vrot.slane %v230, 2
    %v232 = vadd.f32 %v230, %v231
    %v233 = vrot.slane %v232, 1
    %v234 = vadd.f32 %v232, %v233
    %v237 = vunpack.c.l.s4 1966171168
    %v238 = vunpack.c.0.s8 %v237
    %v239 = vlaneseq
    %v240 = vshrl.u32 %v239, 7
    %v241 = vsub.s32 %v238, %v240
    %v242 = vrot.slane %v234, %v241
    %v244 = vunpack.c.l.s4 1966171168
    %v245 = vunpack.c.0.s8 %v244
    %v246 = vlaneseq
    %v247 = vshrl.u32 %v246, 7
    %v248 = vsub.s32 %v245, %v247
    %v249 = vrot.slane %v242, %v248
    %250 = vrot.lane.b32.xlu0 %v249, 96
    %v251 = vpop.permute.xlu0 %250
    %v253 = vadd.f32 %v219, %v251
    %vm254 = vcmask 0
    %255 = vst.msk [vmem:[#allocation3] sm:$0x1] %vm254, %v253
    %v256 = vld [vmem:[#allocation4] sm:$0x1]
    %258 = vset.pattern.permute.xlu0 0
    %259 = vperm.xlu0 %258, %v194
    %v260 = vpop.permute.xlu0 %259
    %v262 = vlaneseq
    %v263 = vshrl.u32 %v262, 7
    %v264 = vsub.s32 0, %v263
    %v265 = vrot.slane %v260, %v264
    %v266 = vmul.f32 %v265, %v256
    %268 = vset.pattern.permute.xlu0 32
    %269 = vperm.xlu0 %268, %v209
    %v270 = vpop.permute.xlu0 %269
    %273 = vset.pattern.permute.xlu0 32
    %274 = vperm.xlu0 %273, %v211
    %v275 = vpop.permute.xlu0 %274
    %278 = vset.pattern.permute.xlu0 32
    %279 = vperm.xlu0 %278, %v213
    %v280 = vpop.permute.xlu0 %279
    %283 = vset.pattern.permute.xlu0 32
    %284 = vperm.xlu0 %283, %v215
    %v285 = vpop.permute.xlu0 %284
    %288 = vset.pattern.permute.xlu0 32
    %289 = vperm.xlu0 %288, %v217
    %v290 = vpop.permute.xlu0 %289
    %v292 = vmul.f32 %v270, %v110
    %v293 = vmul.f32 %v275, %v115
    %v294 = vmul.f32 %v280, %v120
    %v295 = vmul.f32 %v285, %v125
    %v296 = vmul.f32 %v290, %v130
    %v297 = vadd.f32 %v292, %v293
    %v298 = vadd.f32 %v297, %v294
    %v299 = vadd.f32 %v298, %v295
    %v300 = vadd.f32 %v299, %v296
    %v301 = vrot.slane %v300, 4
    %v302 = vadd.f32 %v300, %v301
    %v303 = vrot.slane %v302, 2
    %v304 = vadd.f32 %v302, %v303
    %v305 = vrot.slane %v304, 1
    %v306 = vadd.f32 %v304, %v305
    %v307 = vadd.f32 %v266, %v306
    %308 = vst [vmem:[#allocation4] sm:$0x1] %v307
    %309 = vst.msk [vmem:[#allocation2] sm:$0x1] %vm254, %v191
    // Predicated region
    $region14: #{tpu_custom_call.1} parent=1 // pred_check
      %p310 = pneg %p12
    $region15: #{tpu_custom_call.1} parent=1 // pred_check_branch
      %312 = sbr.rel (%p310) target = $region17
    $region16: #{tpu_custom_call.1} parent=1 // pred_region
      %v313 = vld [vmem:[#allocation3] sm:$0x1]
      %v314 = vrcp.pop %v313
      %v315 = vmul.f32 %v313, %v314
      %v316 = vsub.f32 2.0, %v315
      %v317 = vmul.f32 %v314, %v316
      %v318 = vld [vmem:[#allocation4] sm:$0x1]
      %320 = vset.pattern.permute.xlu0 0
      %321 = vperm.xlu0 %320, %v317
      %v322 = vpop.permute.xlu0 %321
      %v324 = vlaneseq
      %v325 = vshrl.u32 %v324, 7
      %v326 = vsub.s32 0, %v325
      %v327 = vrot.slane %v322, %v326
      %v328 = vmul.f32 %v318, %v327
      %329 = vst [vmem:[#allocation5] sm:$0x1] %v328
    $region17: #{tpu_custom_call.1} parent=1 // pred_fallthru
      _
    // Predicated region
    $region18: #{tpu_custom_call.1} parent=1 // pred_check
      _
    $region19: #{tpu_custom_call.1} parent=1 // pred_check_branch
      %331 = sbr.rel (0) target = $region21
    $region20: #{tpu_custom_call.1} parent=1 // pred_region
      %s333 = ssub.s32 16, 16
      %334 = vsyncadd [#allocation6], %s333
      %s336 = sshll.u32 [#allocation5], 4
      %s337 = int_to_ptr.vmem [resolvable:$true] %s336
      %339 = dma.vmem_to_hbm [thread:$0]  %s337, 16, %s2, [#allocation6]
    $region21: #{tpu_custom_call.1} parent=1 // pred_fallthru
      _
    // Predicated region
    $region22: #{tpu_custom_call.1} parent=1 // pred_check
      _
    $region23: #{tpu_custom_call.1} parent=1 // pred_check_branch
      %341 = sbr.rel (0) target = $region25
    $region24: #{tpu_custom_call.1} parent=1 // pred_region
      %342 = dma.done [#allocation6], 16
    $region25: #{tpu_custom_call.1} parent=1 // pred_fallthru
      _
    %343 = vsyncpa [#allocation6], 1

</llo_original>
